<compile_context>
chip_gen: v5e
topology: v5e:2x2
jax: 0.10.0
libtpu: 0.0.40
codegen_flags: <defaults>
</compile_context>

<pallas_src>
import functools

import jax
import jax.numpy as jnp
from jax.experimental import pallas as pl
from jax.experimental.pallas import tpu as pltpu

_LANE = 128
_SUBLANE = 8


def _round_up(v, m):
    return -(-v // m) * m


@functools.lru_cache(maxsize=None)
def _vmem_limit_cap_bytes():
    """Generation-aware scoped-VMEM cap (leave headroom for Mosaic scratch)."""
    try:
        cap = int(pltpu.get_tpu_info().vmem_capacity_bytes)
    except Exception:  # API drift / CPU tracing: assume the smallest (v7x) part
        cap = 64 << 20
    return min(cap - (12 << 20), int(cap * 0.8))


# --------------------------------------------------------------------------
# Kernels: weights arrive already in the MXU dtype (no per-step big casts).
# --------------------------------------------------------------------------
def _kernel_shortcut(x_ref, w0_ref, b0_ref, w1_ref, b1_ref, ws_ref, o_ref):
    x = x_ref[...]                                      # (tile, in) f32
    h0 = jnp.maximum(x, 0.0).astype(w0_ref.dtype)       # relu(x) -> MXU dtype
    net = jnp.dot(h0, w0_ref[...],
                  preferred_element_type=jnp.float32) + b0_ref[...]
    h1 = jnp.maximum(net, 0.0).astype(w1_ref.dtype)     # relu(net)
    dx = jnp.dot(h1, w1_ref[...],
                 preferred_element_type=jnp.float32) + b1_ref[...]
    x_s = jnp.dot(x, ws_ref[...],                       # bias-free shortcut, f32
                  preferred_element_type=jnp.float32)
    o_ref[...] = (x_s + dx).astype(o_ref.dtype)


def _kernel_identity(x_ref, w0_ref, b0_ref, w1_ref, b1_ref, o_ref):
    x = x_ref[...]
    h0 = jnp.maximum(x, 0.0).astype(w0_ref.dtype)
    net = jnp.dot(h0, w0_ref[...],
                  preferred_element_type=jnp.float32) + b0_ref[...]
    h1 = jnp.maximum(net, 0.0).astype(w1_ref.dtype)
    dx = jnp.dot(h1, w1_ref[...],
                 preferred_element_type=jnp.float32) + b1_ref[...]
    o_ref[...] = (x + dx).astype(o_ref.dtype)           # identity residual in f32


def _pick_tile(n, tile_m):
    """Batch tile: large (HBM roofline) but keep >= 4 grid steps when possible
    (pipeline depth on 1-TC parts; >= 2 steps per TensorCore on v7x)."""
    n_su = _round_up(max(n, 1), _SUBLANE)
    tile = min(tile_m, n_su)
    min_grid = 4
    if n_su >= min_grid * _SUBLANE:
        tile = min(tile, _round_up(pl.cdiv(n_su, min_grid), _SUBLANE))
    return _round_up(tile, _SUBLANE)


@functools.partial(jax.jit,
                   static_argnames=("tile_m", "mxu_dtype", "out_dtype"))
def resnet_block_fc(x, w0, b0, w1, b1, ws=None, *, tile_m=1024,
                    mxu_dtype=jnp.bfloat16, out_dtype=None):
    """Pallas ResnetBlockFC forward.

    x  : (N, size_in)  float32
    w0 : (size_in, size_h),  b0 : (size_h,) or (1, size_h)
    w1 : (size_h, size_out), b1 : (size_out,) or (1, size_out)
    ws : (size_in, size_out) or None (identity shortcut; needs size_in==size_out)
    """
    n, size_in = x.shape
    size_h = w0.shape[1]
    size_out = w1.shape[1]
    if ws is None and size_in != size_out:
        raise ValueError(
            f"identity shortcut requires size_in == size_out, got "
            f"{size_in} != {size_out}; pass a (size_in, size_out) `ws`.")
    if ws is not None and ws.shape != (size_in, size_out):
        raise ValueError(f"ws must be (size_in, size_out); got {ws.shape}")
    out_dtype = x.dtype if out_dtype is None else out_dtype

    x = x.astype(jnp.float32)
    b0 = b0.reshape(1, size_h).astype(jnp.float32)
    b1 = b1.reshape(1, size_out).astype(jnp.float32)
    # Cast grid-invariant weights ONCE here; kernel never re-casts them.
    # Shortcut weight stays f32 so the skip connection keeps full precision.
    w0 = w0.astype(mxu_dtype)
    w1 = w1.astype(mxu_dtype)
    ws = None if ws is None else ws.astype(jnp.float32)
    has_sc = ws is not None

    # ---- batch tiling: pad N only; no feature-lane padding of activations ----
    tile = _pick_tile(n, tile_m)
    n_p = _round_up(n, tile)
    xp = jnp.pad(x, ((0, n_p - n), (0, 0))) if n_p != n else x
    grid = (n_p // tile,)

    # ---- cost estimate (true, unpadded HBM bytes) ----
    mxu_bytes = jnp.dtype(mxu_dtype).itemsize
    out_bytes = jnp.dtype(out_dtype).itemsize
    flops = 2 * n_p * (size_in * size_h + size_h * size_out
                       + (size_in * size_out if has_sc else 0))
    w_hbm = (mxu_bytes * (size_in * size_h + size_h * size_out)
             + 4 * (size_h + size_out)
             + (4 * size_in * size_out if has_sc else 0))
    bytes_accessed = 4 * n_p * size_in + out_bytes * n_p * size_out + w_hbm
    cost = pl.CostEstimate(flops=int(flops), transcendentals=0,
                           bytes_accessed=int(bytes_accessed))

    # ---- VMEM budget: double-buffered I/O tiles + resident weights +
    #      in-kernel f32 intermediates, at lane-rounded physical widths ----
    in_v = _round_up(size_in, _LANE)
    h_v = _round_up(size_h, _LANE)
    out_v = _round_up(size_out, _LANE)
    io_bytes = 2 * tile * in_v * 4 + 2 * tile * out_v * out_bytes
    w_vmem = (mxu_bytes * (in_v * h_v + h_v * out_v) + 4 * (h_v + out_v)
              + (4 * in_v * out_v if has_sc else 0))
    tmp_bytes = (tile * (in_v + 2 * h_v + 2 * out_v) * 4        # h0/net/h1/dx/x_s
                 + tile * (in_v + h_v) * mxu_bytes)             # activation casts
    vmem_needed = io_bytes + 2 * w_vmem + tmp_bytes + (2 << 20)
    vmem_limit = int(min(max(vmem_needed, 32 << 20), _vmem_limit_cap_bytes()))
    # TODO(synk): add a K-tiled fallback (extra "arbitrary" grid axis with a
    # VMEM f32 accumulator) once resident weights exceed ~1/3 of the VMEM cap.

    x_spec = pl.BlockSpec((tile, size_in), lambda i: (i, 0))
    w0_spec = pl.BlockSpec((size_in, size_h), lambda i: (0, 0))
    b0_spec = pl.BlockSpec((1, size_h), lambda i: (0, 0))
    w1_spec = pl.BlockSpec((size_h, size_out), lambda i: (0, 0))
    b1_spec = pl.BlockSpec((1, size_out), lambda i: (0, 0))
    out_spec = pl.BlockSpec((tile, size_out), lambda i: (i, 0))
    out_shape = jax.ShapeDtypeStruct((n_p, size_out), out_dtype)
    cparams = pltpu.CompilerParams(dimension_semantics=("parallel",),
                                   vmem_limit_bytes=vmem_limit)

    if has_sc:
        ws_spec = pl.BlockSpec((size_in, size_out), lambda i: (0, 0))
        kern = _kernel_shortcut
        in_specs = [x_spec, w0_spec, b0_spec, w1_spec, b1_spec, ws_spec]
        args = (xp, w0, b0, w1, b1, ws)
    else:
        kern = _kernel_identity
        in_specs = [x_spec, w0_spec, b0_spec, w1_spec, b1_spec]
        args = (xp, w0, b0, w1, b1)

    out = pl.pallas_call(
        kern,
        out_shape=out_shape,
        grid_spec=pltpu.PrefetchScalarGridSpec(
            num_scalar_prefetch=0,
            grid=grid,
            in_specs=in_specs,
            out_specs=out_spec),
        compiler_params=cparams,
        cost_estimate=cost,
    )(*args)

    # Strip batch padding only (features were never padded).
    return out[:n] if n_p != n else out


def init_params(key, size_in, size_out=None, size_h=None):
    """Synthetic init mirroring the PyTorch module (fc_1.weight zero-init)."""
    if size_out is None:
        size_out = size_in
    if size_h is None:
        size_h = min(size_in, size_out)
    k0, k0b, k1b, ks = jax.random.split(key, 4)
    bound0 = 1.0 / jnp.sqrt(size_in)
    bound1 = 1.0 / jnp.sqrt(size_h)
    # weights stored as (in, out) == PyTorch weight.T
    w0 = jax.random.uniform(k0, (size_in, size_h), jnp.float32, -bound0, bound0)
    b0 = jax.random.uniform(k0b, (1, size_h), jnp.float32, -bound0, bound0)
    w1 = jnp.zeros((size_h, size_out), jnp.float32)      # nn.init.zeros_
    b1 = jax.random.uniform(k1b, (1, size_out), jnp.float32, -bound1, bound1)
    if size_in == size_out:
        ws = None
    else:
        ws = jax.random.uniform(ks, (size_in, size_out), jnp.float32,
                                -bound0, bound0)
    return w0, b0, w1, b1, ws


def resnet_block_fc_ref(x, w0, b0, w1, b1, ws):
    """Pure-JAX reference for correctness checking."""
    net = jnp.maximum(x, 0.0) @ w0 + b0
    dx = jnp.maximum(net, 0.0) @ w1 + b1
    x_s = x @ ws if ws is not None else x
    return x_s + dx


if __name__ == "__main__":
    key = jax.random.PRNGKey(0)
    k_x, k_p, k_w1 = jax.random.split(key, 3)

    # Projection-shortcut path: 1024 points, size_in=16 -> size_out=32
    # (hidden = min(16, 32) = 16). Use a non-zero fc_1 weight so the second
    # matmul is numerically exercised (the module zero-inits it).
    size_in, size_out = 16, 32
    n = 1024
    x = jax.random.normal(k_x, (n, size_in), jnp.float32)
    w0, b0, w1, b1, ws = init_params(k_p, size_in, size_out)
    w1 = jax.random.uniform(k_w1, w1.shape, jnp.float32, -0.25, 0.25)
    ref = resnet_block_fc_ref(x, w0, b0, w1, b1, ws)

    # Default path: bf16 MXU operands, f32 accumulation, f32 shortcut/residual.
    out = jax.block_until_ready(resnet_block_fc(x, w0, b0, w1, b1, ws))
    assert out.shape == (n, size_out)
    assert jnp.allclose(out, ref, atol=2e-2, rtol=2e-2), \
        float(jnp.max(jnp.abs(out - ref)))

    # Full-f32 MXU path: tight check.
    out32 = jax.block_until_ready(
        resnet_block_fc(x, w0, b0, w1, b1, ws, mxu_dtype=jnp.float32))
    assert jnp.allclose(out32, ref, atol=1e-4, rtol=1e-4), \
        float(jnp.max(jnp.abs(out32 - ref)))

    # Identity-shortcut path with a ragged batch (exercises N padding).
    n_i = 1000
    xi = jax.random.normal(k_x, (n_i, size_in), jnp.float32)
    w0i, b0i, w1i, b1i, _ = init_params(k_p, size_in, size_in)
    w1i = jax.random.uniform(k_w1, w1i.shape, jnp.float32, -0.25, 0.25)
    out_i = jax.block_until_ready(
        resnet_block_fc(xi, w0i, b0i, w1i, b1i, None, mxu_dtype=jnp.float32))
    ref_i = resnet_block_fc_ref(xi, w0i, b0i, w1i, b1i, None)
    assert out_i.shape == (n_i, size_in)
    assert jnp.allclose(out_i, ref_i, atol=1e-4, rtol=1e-4), \
        float(jnp.max(jnp.abs(out_i - ref_i)))

    print("KERNEL_OK")
</pallas_src>

<mosaic_0001>
module attributes {stable_mosaic.version = 11 : i64} {
  func.func @_kernel_shortcut(%arg0: i32, %arg1: memref<256x16xf32, #tpu.memory_space<vmem>>, %arg2: memref<16x16xbf16, #tpu.memory_space<vmem>>, %arg3: memref<1x16xf32, #tpu.memory_space<vmem>>, %arg4: memref<16x32xbf16, #tpu.memory_space<vmem>>, %arg5: memref<1x32xf32, #tpu.memory_space<vmem>>, %arg6: memref<16x32xf32, #tpu.memory_space<vmem>>, %arg7: memref<256x32xf32, #tpu.memory_space<vmem>>) attributes {dimension_semantics = [#tpu.dimension_semantics<parallel>], iteration_bounds = array<i64: 4>, scalar_prefetch = 0 : i64, scratch_operands = 0 : i64, tpu.core_type = #tpu.core_type<tc>, window_params = [{transform_indices = @transform_0, window_bounds = array<i64: 256, 16>}, {pipeline_mode = #tpu.pipeline_mode<synchronous>, transform_indices = @transform_1, window_bounds = array<i64: 16, 16>}, {pipeline_mode = #tpu.pipeline_mode<synchronous>, transform_indices = @transform_2, window_bounds = array<i64: 1, 16>}, {pipeline_mode = #tpu.pipeline_mode<synchronous>, transform_indices = @transform_3, window_bounds = array<i64: 16, 32>}, {pipeline_mode = #tpu.pipeline_mode<synchronous>, transform_indices = @transform_4, window_bounds = array<i64: 1, 32>}, {pipeline_mode = #tpu.pipeline_mode<synchronous>, transform_indices = @transform_5, window_bounds = array<i64: 16, 32>}, {transform_indices = @transform_6, window_bounds = array<i64: 256, 32>}]} {
    %c0 = arith.constant 0 : index
    %c0_0 = arith.constant 0 : index
    %0 = vector.load %arg1[%c0, %c0_0] : memref<256x16xf32, #tpu.memory_space<vmem>>, vector<256x16xf32>
    %cst = arith.constant 0.000000e+00 : f32
    %1 = vector.broadcast %cst : f32 to vector<256x16xf32>
    %2 = arith.maximumf %0, %1 : vector<256x16xf32>
    %3 = arith.truncf %2 : vector<256x16xf32> to vector<256x16xbf16>
    %c0_1 = arith.constant 0 : index
    %c0_2 = arith.constant 0 : index
    %4 = vector.load %arg2[%c0_1, %c0_2] : memref<16x16xbf16, #tpu.memory_space<vmem>>, vector<16x16xbf16>
    %cst_3 = arith.constant dense<0.000000e+00> : vector<256x16xf32>
    %5 = tpu.matmul %3, %4, %cst_3 {dimension_numbers = #tpu.dot_dimension_numbers<[1], [0], [0], [1], [0, 0, 1, 1], [], []>} : vector<256x16xbf16>, vector<16x16xbf16>, vector<256x16xf32> -> vector<256x16xf32>
    %c0_4 = arith.constant 0 : index
    %c0_5 = arith.constant 0 : index
    %6 = vector.load %arg3[%c0_4, %c0_5] : memref<1x16xf32, #tpu.memory_space<vmem>>, vector<1x16xf32>
    %7 = vector.broadcast %6 : vector<1x16xf32> to vector<256x16xf32>
    %8 = arith.addf %5, %7 : vector<256x16xf32>
    %cst_6 = arith.constant 0.000000e+00 : f32
    %9 = vector.broadcast %cst_6 : f32 to vector<256x16xf32>
    %10 = arith.maximumf %8, %9 : vector<256x16xf32>
    %11 = arith.truncf %10 : vector<256x16xf32> to vector<256x16xbf16>
    %c0_7 = arith.constant 0 : index
    %c0_8 = arith.constant 0 : index
    %12 = vector.load %arg4[%c0_7, %c0_8] : memref<16x32xbf16, #tpu.memory_space<vmem>>, vector<16x32xbf16>
    %cst_9 = arith.constant dense<0.000000e+00> : vector<256x32xf32>
    %13 = tpu.matmul %11, %12, %cst_9 {dimension_numbers = #tpu.dot_dimension_numbers<[1], [0], [0], [1], [0, 0, 1, 1], [], []>} : vector<256x16xbf16>, vector<16x32xbf16>, vector<256x32xf32> -> vector<256x32xf32>
    %c0_10 = arith.constant 0 : index
    %c0_11 = arith.constant 0 : index
    %14 = vector.load %arg5[%c0_10, %c0_11] : memref<1x32xf32, #tpu.memory_space<vmem>>, vector<1x32xf32>
    %15 = vector.broadcast %14 : vector<1x32xf32> to vector<256x32xf32>
    %16 = arith.addf %13, %15 : vector<256x32xf32>
    %c0_12 = arith.constant 0 : index
    %c0_13 = arith.constant 0 : index
    %17 = vector.load %arg6[%c0_12, %c0_13] : memref<16x32xf32, #tpu.memory_space<vmem>>, vector<16x32xf32>
    %cst_14 = arith.constant dense<0.000000e+00> : vector<256x32xf32>
    %18 = tpu.matmul %0, %17, %cst_14 {dimension_numbers = #tpu.dot_dimension_numbers<[1], [0], [0], [1], [0, 0, 1, 1], [], []>} : vector<256x16xf32>, vector<16x32xf32>, vector<256x32xf32> -> vector<256x32xf32>
    %19 = arith.addf %18, %16 : vector<256x32xf32>
    %c0_15 = arith.constant 0 : index
    %c0_16 = arith.constant 0 : index
    %20 = vector.load %arg7[%c0_15, %c0_16] : memref<256x32xf32, #tpu.memory_space<vmem>>, vector<256x32xf32>
    tpu.vector_store %arg7[%c0_15, %c0_16], %19 {strides = array<i32>} : memref<256x32xf32, #tpu.memory_space<vmem>>, vector<256x32xf32>,
    return
  }
  func.func @transform_0(%arg0: i32) -> (i32, i32) {
    %c0_i32 = arith.constant 0 : i32
    %c0_i32_0 = arith.constant 0 : i32
    return %arg0, %c0_i32 : i32, i32
  }
  func.func @transform_1(%arg0: i32) -> (i32, i32) {
    %c0_i32 = arith.constant 0 : i32
    %c0_i32_0 = arith.constant 0 : i32
    %c0_i32_1 = arith.constant 0 : i32
    return %c0_i32, %c0_i32_0 : i32, i32
  }
  func.func @transform_2(%arg0: i32) -> (i32, i32) {
    %c0_i32 = arith.constant 0 : i32
    %c0_i32_0 = arith.constant 0 : i32
    %c0_i32_1 = arith.constant 0 : i32
    return %c0_i32, %c0_i32_0 : i32, i32
  }
  func.func @transform_3(%arg0: i32) -> (i32, i32) {
    %c0_i32 = arith.constant 0 : i32
    %c0_i32_0 = arith.constant 0 : i32
    %c0_i32_1 = arith.constant 0 : i32
    return %c0_i32, %c0_i32_0 : i32, i32
  }
  func.func @transform_4(%arg0: i32) -> (i32, i32) {
    %c0_i32 = arith.constant 0 : i32
    %c0_i32_0 = arith.constant 0 : i32
    %c0_i32_1 = arith.constant 0 : i32
    return %c0_i32, %c0_i32_0 : i32, i32
  }
  func.func @transform_5(%arg0: i32) -> (i32, i32) {
    %c0_i32 = arith.constant 0 : i32
    %c0_i32_0 = arith.constant 0 : i32
    %c0_i32_1 = arith.constant 0 : i32
    return %c0_i32, %c0_i32_0 : i32, i32
  }
  func.func @transform_6(%arg0: i32) -> (i32, i32) {
    %c0_i32 = arith.constant 0 : i32
    %c0_i32_0 = arith.constant 0 : i32
    return %arg0, %c0_i32 : i32, i32
  }
}

</mosaic_0001>

<llo_original>
// kernel: resnet_block_fc.1
$region0: #{resnet_block_fc.1}
  #allocation0 [shape = 'u32[]', space=smem, size = 0x4, offset = 0x4, fixed_abs, tag = 'smem constant byte address 0x4 - core index']
  #allocation1 [shape = 'u32[72,128]{1,0:T(1,128)}', space=vmem, size = 0x9000, scoped, tag = 'internal scratch']
  %s0 = inlined_call_operand.vmem [shape: f32[1024,16], index: 0, kind: input, shape index: {}]
  %s1 = inlined_call_operand.vmem [shape: bf16[16,16], index: 1, kind: input, shape index: {}]
  %s2 = inlined_call_operand.vmem [shape: f32[1,16], index: 2, kind: input, shape index: {}]
  %s3 = inlined_call_operand.vmem [shape: bf16[16,32], index: 3, kind: input, shape index: {}]
  %s4 = inlined_call_operand.vmem [shape: f32[1,32], index: 4, kind: input, shape index: {}]
  %s5 = inlined_call_operand.vmem [shape: f32[16,32], index: 5, kind: input, shape index: {}]
  %s6 = inlined_call_operand.vmem [shape: f32[1024,32], index: 6, kind: output, shape index: {}]
  %s7 = sld [smem:[#allocation0]]
  $region57: #{resnet_block_fc.1} parent=0
    _
  %s9 = ssub.s32 1, %s7
  %s10 = scalar_select 0, %s9, %s7
  loop: start=0, step=1, limit=6
  $region2: #{resnet_block_fc.1} parent=0 // loop_pre_header
    _
  $region3: #{resnet_block_fc.1} parent=0 // loop_header
    %s12 = sphi 0, %s16
    %p13 = scmp.ge.s32.totalorder %s12, 6
    %s22 = sphi 0, %s24
    %s25 = sphi 0, %s22
    %s26 = sphi 0, %s25
    %s42 = sphi 0, %s26
    %s46 = sphi 0, %s46
    %s48 = sphi 0, %s46
    %s49 = sphi 0, %s48
    %s63 = sphi 0, %s49
    %s67 = sphi 0, %s67
    %s69 = sphi 0, %s67
    %s70 = sphi 0, %s69
    %s84 = sphi 0, %s70
    %s88 = sphi 0, %s88
    %s90 = sphi 0, %s88
    %s91 = sphi 0, %s90
    %s105 = sphi 0, %s91
    %s109 = sphi 0, %s109
    %s111 = sphi 0, %s109
    %s112 = sphi 0, %s111
    %s126 = sphi 0, %s112
    %s130 = sphi 0, %s130
    %s132 = sphi 0, %s130
    %s133 = sphi 0, %s132
    %s147 = sphi 0, %s133
    %s153 = sphi 0, %s155
    %s156 = sphi 0, %s153
    %s157 = sphi 0, %s156
    %s173 = sphi 0, %s157
  $region4: #{resnet_block_fc.1} parent=0 // loop_header_branch
    %15 = sbr.rel (%p13) target = $region8
  $region5: #{resnet_block_fc.1} parent=0 // loop_body
    %s17 = ssub.s32 %s12, 1
    %s18 = ssub.s32 %s12, 2
    %s19 = sadd.s32 %s12, 1
    %s20 = ssub.s32 %s12, %s19
    %p21 = scmp.eq.s32.totalorder %s20, 0
    %s23 = sadd.s32 %s22, 1
    %s24 = scalar_select %p21, %s22, %s23
    %p27 = pneg %p21
    %p28 = scmp.eq.s32.totalorder %s12, 3
    %p29 = por %p27, %p28
    %p30 = scmp.ne.s32.totalorder %s22, %s25
    %p31 = scmp.eq.s32.totalorder %s12, 0
    %p32 = por %p30, %p31
    %p33 = scmp.ne.s32.totalorder %s22, %s25
    %p34 = scmp.eq.s32.totalorder %s17, 3
    %p35 = por %p33, %p34
    %p36 = scmp.ne.s32.totalorder %s25, %s26
    %p37 = scmp.eq.s32.totalorder %s17, 0
    %p38 = por %p36, %p37
    %p39 = scmp.ne.s32.totalorder %s25, %s26
    %p40 = scmp.eq.s32.totalorder %s18, 3
    %p41 = por %p39, %p40
    %p43 = scmp.ne.s32.totalorder %s26, %s42
    %p44 = scmp.eq.s32.totalorder %s18, 0
    %p45 = por %p43, %p44
    %s47 = sadd.s32 %s46, 1
    %p50 = scmp.eq.s32.totalorder %s12, 3
    %p51 = scmp.ne.s32.totalorder %s46, %s48
    %p52 = scmp.eq.s32.totalorder %s12, 0
    %p53 = por %p51, %p52
    %p54 = scmp.ne.s32.totalorder %s46, %s48
    %p55 = scmp.eq.s32.totalorder %s17, 3
    %p56 = por %p54, %p55
    %p57 = scmp.ne.s32.totalorder %s48, %s49
    %p58 = scmp.eq.s32.totalorder %s17, 0
    %p59 = por %p57, %p58
    %p60 = scmp.ne.s32.totalorder %s48, %s49
    %p61 = scmp.eq.s32.totalorder %s18, 3
    %p62 = por %p60, %p61
    %p64 = scmp.ne.s32.totalorder %s49, %s63
    %p65 = scmp.eq.s32.totalorder %s18, 0
    %p66 = por %p64, %p65
    %s68 = sadd.s32 %s67, 1
    %p71 = scmp.eq.s32.totalorder %s12, 3
    %p72 = scmp.ne.s32.totalorder %s67, %s69
    %p73 = scmp.eq.s32.totalorder %s12, 0
    %p74 = por %p72, %p73
    %p75 = scmp.ne.s32.totalorder %s67, %s69
    %p76 = scmp.eq.s32.totalorder %s17, 3
    %p77 = por %p75, %p76
    %p78 = scmp.ne.s32.totalorder %s69, %s70
    %p79 = scmp.eq.s32.totalorder %s17, 0
    %p80 = por %p78, %p79
    %p81 = scmp.ne.s32.totalorder %s69, %s70
    %p82 = scmp.eq.s32.totalorder %s18, 3
    %p83 = por %p81, %p82
    %p85 = scmp.ne.s32.totalorder %s70, %s84
    %p86 = scmp.eq.s32.totalorder %s18, 0
    %p87 = por %p85, %p86
    %s89 = sadd.s32 %s88, 1
    %p92 = scmp.eq.s32.totalorder %s12, 3
    %p93 = scmp.ne.s32.totalorder %s88, %s90
    %p94 = scmp.eq.s32.totalorder %s12, 0
    %p95 = por %p93, %p94
    %p96 = scmp.ne.s32.totalorder %s88, %s90
    %p97 = scmp.eq.s32.totalorder %s17, 3
    %p98 = por %p96, %p97
    %p99 = scmp.ne.s32.totalorder %s90, %s91
    %p100 = scmp.eq.s32.totalorder %s17, 0
    %p101 = por %p99, %p100
    %p102 = scmp.ne.s32.totalorder %s90, %s91
    %p103 = scmp.eq.s32.totalorder %s18, 3
    %p104 = por %p102, %p103
    %p106 = scmp.ne.s32.totalorder %s91, %s105
    %p107 = scmp.eq.s32.totalorder %s18, 0
    %p108 = por %p106, %p107
    %s110 = sadd.s32 %s109, 1
    %p113 = scmp.eq.s32.totalorder %s12, 3
    %p114 = scmp.ne.s32.totalorder %s109, %s111
    %p115 = scmp.eq.s32.totalorder %s12, 0
    %p116 = por %p114, %p115
    %p117 = scmp.ne.s32.totalorder %s109, %s111
    %p118 = scmp.eq.s32.totalorder %s17, 3
    %p119 = por %p117, %p118
    %p120 = scmp.ne.s32.totalorder %s111, %s112
    %p121 = scmp.eq.s32.totalorder %s17, 0
    %p122 = por %p120, %p121
    %p123 = scmp.ne.s32.totalorder %s111, %s112
    %p124 = scmp.eq.s32.totalorder %s18, 3
    %p125 = por %p123, %p124
    %p127 = scmp.ne.s32.totalorder %s112, %s126
    %p128 = scmp.eq.s32.totalorder %s18, 0
    %p129 = por %p127, %p128
    %s131 = sadd.s32 %s130, 1
    %p134 = scmp.eq.s32.totalorder %s12, 3
    %p135 = scmp.ne.s32.totalorder %s130, %s132
    %p136 = scmp.eq.s32.totalorder %s12, 0
    %p137 = por %p135, %p136
    %p138 = scmp.ne.s32.totalorder %s130, %s132
    %p139 = scmp.eq.s32.totalorder %s17, 3
    %p140 = por %p138, %p139
    %p141 = scmp.ne.s32.totalorder %s132, %s133
    %p142 = scmp.eq.s32.totalorder %s17, 0
    %p143 = por %p141, %p142
    %p144 = scmp.ne.s32.totalorder %s132, %s133
    %p145 = scmp.eq.s32.totalorder %s18, 3
    %p146 = por %p144, %p145
    %p148 = scmp.ne.s32.totalorder %s133, %s147
    %p149 = scmp.eq.s32.totalorder %s18, 0
    %p150 = por %p148, %p149
    %s151 = ssub.s32 %s12, %s19
    %p152 = scmp.eq.s32.totalorder %s151, 0
    %s154 = sadd.s32 %s153, 1
    %s155 = scalar_select %p152, %s153, %s154
    %p158 = pneg %p152
    %p159 = scmp.eq.s32.totalorder %s12, 3
    %p160 = por %p158, %p159
    %p161 = scmp.ne.s32.totalorder %s153, %s156
    %p162 = scmp.eq.s32.totalorder %s12, 0
    %p163 = por %p161, %p162
    %p164 = scmp.ne.s32.totalorder %s153, %s156
    %p165 = scmp.eq.s32.totalorder %s17, 3
    %p166 = por %p164, %p165
    %p167 = scmp.ne.s32.totalorder %s156, %s157
    %p168 = scmp.eq.s32.totalorder %s17, 0
    %p169 = por %p167, %p168
    %p170 = scmp.ne.s32.totalorder %s156, %s157
    %p171 = scmp.eq.s32.totalorder %s18, 3
    %p172 = por %p170, %p171
    %p174 = scmp.ne.s32.totalorder %s157, %s173
    %p175 = scmp.eq.s32.totalorder %s18, 0
    %p176 = por %p174, %p175
    %p177 = scmp.le.s32.totalorder 1, %s12
    %p178 = scmp.lt.s32.totalorder %s12, 5
    %p179 = pnand %p177, %p178
    %p180 = pneg %p179
    // Predicated region
    $region9: #{resnet_block_fc.1} parent=5 // pred_check
      _
    $region10: #{resnet_block_fc.1} parent=5 // pred_check_branch
      %182 = sbr.rel (%p179) target = $region12
    $region11: #{resnet_block_fc.1} parent=5 // pred_region
      %s183 = ssub.s32 %s12, 1
      // Predicated region
      $region13: #{resnet_block_fc.1} parent=11 // pred_check
        %p184 = pneg %p59
      $region14: #{resnet_block_fc.1} parent=11 // pred_check_branch
        %186 = sbr.rel (%p184) target = $region16
      $region15: #{resnet_block_fc.1} parent=11 // pred_region
        _
      $region16: #{resnet_block_fc.1} parent=11 // pred_fallthru
        _
      // Predicated region
      $region17: #{resnet_block_fc.1} parent=11 // pred_check
        %p187 = pneg %p80
      $region18: #{resnet_block_fc.1} parent=11 // pred_check_branch
        %189 = sbr.rel (%p187) target = $region20
      $region19: #{resnet_block_fc.1} parent=11 // pred_region
        _
      $region20: #{resnet_block_fc.1} parent=11 // pred_fallthru
        _
      // Predicated region
      $region21: #{resnet_block_fc.1} parent=11 // pred_check
        %p190 = pneg %p101
      $region22: #{resnet_block_fc.1} parent=11 // pred_check_branch
        %192 = sbr.rel (%p190) target = $region24
      $region23: #{resnet_block_fc.1} parent=11 // pred_region
        _
      $region24: #{resnet_block_fc.1} parent=11 // pred_fallthru
        _
      // Predicated region
      $region25: #{resnet_block_fc.1} parent=11 // pred_check
        %p193 = pneg %p122
      $region26: #{resnet_block_fc.1} parent=11 // pred_check_branch
        %195 = sbr.rel (%p193) target = $region28
      $region27: #{resnet_block_fc.1} parent=11 // pred_region
        _
      $region28: #{resnet_block_fc.1} parent=11 // pred_fallthru
        _
      // Predicated region
      $region29: #{resnet_block_fc.1} parent=11 // pred_check
        %p196 = pneg %p143
      $region30: #{resnet_block_fc.1} parent=11 // pred_check_branch
        %198 = sbr.rel (%p196) target = $region32
      $region31: #{resnet_block_fc.1} parent=11 // pred_region
        _
      $region32: #{resnet_block_fc.1} parent=11 // pred_fallthru
        _
    $region12: #{resnet_block_fc.1} parent=5 // pred_fallthru
      _
    %p199 = scmp.lt.s32.totalorder %s12, 4
    // Predicated region
    $region33: #{resnet_block_fc.1} parent=5 // pred_check
      %p200 = pneg %p199
    $region34: #{resnet_block_fc.1} parent=5 // pred_check_branch
      %202 = sbr.rel (%p200) target = $region36
    $region35: #{resnet_block_fc.1} parent=5 // pred_region
      // Predicated region
      $region37: #{resnet_block_fc.1} parent=35 // pred_check
        %p203 = pneg %p32
      $region38: #{resnet_block_fc.1} parent=35 // pred_check_branch
        %205 = sbr.rel (%p203) target = $region40
      $region39: #{resnet_block_fc.1} parent=35 // pred_region
        %s206 = smul.u32 32, %s12
        %p207 = scmp.lt.s32.totalorder %s206, 127
        %s208 = scalar_select %p207, %s206, 127
        %s209 = smul.addr %s208, 8
        %s210 = scalar_lea.vmem %s0, %s209
        %s211 = smul.u32 32, %s12
      $region40: #{resnet_block_fc.1} parent=35 // pred_fallthru
        _
    $region36: #{resnet_block_fc.1} parent=5 // pred_fallthru
      _
    %p212 = scmp.le.s32.totalorder 1, %s12
    %p213 = scmp.lt.s32.totalorder %s12, 5
    %p214 = pnand %p212, %p213
    %p215 = pneg %p214
    // Predicated region
    $region41: #{resnet_block_fc.1} parent=5 // pred_check
      _
    $region42: #{resnet_block_fc.1} parent=5 // pred_check_branch
      %217 = sbr.rel (%p214) target = $region44
    $region43: #{resnet_block_fc.1} parent=5 // pred_region
      %s218 = ssub.s32 %s12, 1
      %s219 = smul.u32 32, %s17
      %p220 = scmp.lt.s32.totalorder %s219, 127
      %s221 = scalar_select %p220, %s219, 127
      %s222 = smul.addr %s221, 8
      %s223 = scalar_lea.vmem %s0, %s222
      %p224 = pneg %p38
      %p225 = pneg %p35
      %p226 = pneg %p59
      %p227 = pneg %p56
      %p228 = pneg %p80
      %p229 = pneg %p77
      %p230 = pneg %p101
      %p231 = pneg %p98
      %p232 = pneg %p122
      %p233 = pneg %p119
      %p234 = pneg %p143
      %p235 = pneg %p140
      %p236 = pneg %p169
      %p237 = pneg %p166
      %s238 = smul.u32 32, %s17
      %p239 = scmp.lt.s32.totalorder %s238, 127
      %s240 = scalar_select %p239, %s238, 127
      %s241 = smul.addr %s240, 8
      %s242 = scalar_lea.vmem %s6, %s241
      %s243 = smul.u32 32, %s17
      %p244 = scmp.lt.s32.totalorder %s243, 127
      %s245 = scalar_select %p244, %s243, 127
      %s246 = smul.addr %s245, 8
      %s247 = scalar_lea.vmem %s0, %s246
      %s248 = smul.u32 32, %s17
      %s249 = smul.u32 32, %s17
      %p250 = scmp.lt.s32.totalorder %s249, 127
      %s251 = scalar_select %p250, %s249, 127
      %s252 = smul.addr %s251, 8
      %s253 = scalar_lea.vmem %s6, %s252
      %s254 = smul.u32 32, %s17
      %v256 = vld [vmem:[%s247] sm:$0xff]
      %v257 = vld [vmem:[%s247 + $0x8] sm:$0xff]
      %v258 = vld [vmem:[%s247 + $0x10] sm:$0xff]
      %v259 = vld [vmem:[%s247 + $0x18] sm:$0xff]
      %v260 = vld [vmem:[%s247 + $0x20] sm:$0xff]
      %v261 = vld [vmem:[%s247 + $0x28] sm:$0xff]
      %v262 = vld [vmem:[%s247 + $0x30] sm:$0xff]
      %v263 = vld [vmem:[%s247 + $0x38] sm:$0xff]
      %v264 = vld [vmem:[%s247 + $0x40] sm:$0xff]
      %v265 = vld [vmem:[%s247 + $0x48] sm:$0xff]
      %v266 = vld [vmem:[%s247 + $0x50] sm:$0xff]
      %v267 = vld [vmem:[%s247 + $0x58] sm:$0xff]
      %v268 = vld [vmem:[%s247 + $0x60] sm:$0xff]
      %v269 = vld [vmem:[%s247 + $0x68] sm:$0xff]
      %v270 = vld [vmem:[%s247 + $0x70] sm:$0xff]
      %v271 = vld [vmem:[%s247 + $0x78] sm:$0xff]
      %v272 = vld [vmem:[%s247 + $0x80] sm:$0xff]
      %v273 = vld [vmem:[%s247 + $0x88] sm:$0xff]
      %v274 = vld [vmem:[%s247 + $0x90] sm:$0xff]
      %v275 = vld [vmem:[%s247 + $0x98] sm:$0xff]
      %v276 = vld [vmem:[%s247 + $0xa0] sm:$0xff]
      %v277 = vld [vmem:[%s247 + $0xa8] sm:$0xff]
      %v278 = vld [vmem:[%s247 + $0xb0] sm:$0xff]
      %v279 = vld [vmem:[%s247 + $0xb8] sm:$0xff]
      %v280 = vld [vmem:[%s247 + $0xc0] sm:$0xff]
      %v281 = vld [vmem:[%s247 + $0xc8] sm:$0xff]
      %v282 = vld [vmem:[%s247 + $0xd0] sm:$0xff]
      %v283 = vld [vmem:[%s247 + $0xd8] sm:$0xff]
      %v284 = vld [vmem:[%s247 + $0xe0] sm:$0xff]
      %v285 = vld [vmem:[%s247 + $0xe8] sm:$0xff]
      %v286 = vld [vmem:[%s247 + $0xf0] sm:$0xff]
      %v287 = vld [vmem:[%s247 + $0xf8] sm:$0xff]
      %v288 = vmax.f32 %v256, 0.0
      %v289 = vmax.f32 %v257, 0.0
      %v290 = vmax.f32 %v258, 0.0
      %v291 = vmax.f32 %v259, 0.0
      %v292 = vmax.f32 %v260, 0.0
      %v293 = vmax.f32 %v261, 0.0
      %v294 = vmax.f32 %v262, 0.0
      %v295 = vmax.f32 %v263, 0.0
      %v296 = vmax.f32 %v264, 0.0
      %v297 = vmax.f32 %v265, 0.0
      %v298 = vmax.f32 %v266, 0.0
      %v299 = vmax.f32 %v267, 0.0
      %v300 = vmax.f32 %v268, 0.0
      %v301 = vmax.f32 %v269, 0.0
      %v302 = vmax.f32 %v270, 0.0
      %v303 = vmax.f32 %v271, 0.0
      %v304 = vmax.f32 %v272, 0.0
      %v305 = vmax.f32 %v273, 0.0
      %v306 = vmax.f32 %v274, 0.0
      %v307 = vmax.f32 %v275, 0.0
      %v308 = vmax.f32 %v276, 0.0
      %v309 = vmax.f32 %v277, 0.0
      %v310 = vmax.f32 %v278, 0.0
      %v311 = vmax.f32 %v279, 0.0
      %v312 = vmax.f32 %v280, 0.0
      %v313 = vmax.f32 %v281, 0.0
      %v314 = vmax.f32 %v282, 0.0
      %v315 = vmax.f32 %v283, 0.0
      %v316 = vmax.f32 %v284, 0.0
      %v317 = vmax.f32 %v285, 0.0
      %v318 = vmax.f32 %v286, 0.0
      %v319 = vmax.f32 %v287, 0.0
      %v320 = vpack.c.bf16 %v289, %v288
      %v321 = vpack.c.bf16 %v291, %v290
      %v322 = vpack.c.bf16 %v293, %v292
      %v323 = vpack.c.bf16 %v295, %v294
      %v324 = vpack.c.bf16 %v297, %v296
      %v325 = vpack.c.bf16 %v299, %v298
      %v326 = vpack.c.bf16 %v301, %v300
      %v327 = vpack.c.bf16 %v303, %v302
      %v328 = vpack.c.bf16 %v305, %v304
      %v329 = vpack.c.bf16 %v307, %v306
      %v330 = vpack.c.bf16 %v309, %v308
      %v331 = vpack.c.bf16 %v311, %v310
      %v332 = vpack.c.bf16 %v313, %v312
      %v333 = vpack.c.bf16 %v315, %v314
      %v334 = vpack.c.bf16 %v317, %v316
      %v335 = vpack.c.bf16 %v319, %v318
      %v336 = vld [vmem:[%s1] sm:$0xf]
      %v337 = vld [vmem:[%s1 + $0x4] sm:$0xf]
      %v338 = vld [vmem:[%s2] sm:$0x1]
      %v340 = vperm.slane %v338, 0
      %v344 = vunpack.c.l.b16 %v336
      %v345 = vunpack.c.l.b16 %v337
      %v346 = vpack.c.b16 %v345, %v344
      %vm348 = vcmask 130048
      %v350 = vsel %vm348, %v320, 0
      %v353 = vsel %vm348, %v321, 0
      %v356 = vsel %vm348, %v322, 0
      %v359 = vsel %vm348, %v323, 0
      %v362 = vsel %vm348, %v324, 0
      %v365 = vsel %vm348, %v325, 0
      %v368 = vsel %vm348, %v326, 0
      %v371 = vsel %vm348, %v327, 0
      %v374 = vsel %vm348, %v328, 0
      %v377 = vsel %vm348, %v329, 0
      %v380 = vsel %vm348, %v330, 0
      %v383 = vsel %vm348, %v331, 0
      %v386 = vsel %vm348, %v332, 0
      %v389 = vsel %vm348, %v333, 0
      %v392 = vsel %vm348, %v334, 0
      %v395 = vsel %vm348, %v335, 0
      %397 = vmatpush.bf16.msra.mxu0 0
      %398 = vmatpush.bf16.msra.mxu0 0
      %399 = vmatpush.bf16.msra.mxu0 0
      %400 = vmatpush.bf16.msra.mxu0 0
      %401 = vmatpush.bf16.msra.mxu0 0
      %402 = vmatpush.bf16.msra.mxu0 0
      %403 = vmatpush.bf16.msra.mxu0 0
      %404 = vmatpush.bf16.msra.mxu0 %v346
      %405 = vmatmul.bf16.gmra.mxu0 %v350
      %v406 = vpop.f32.mrf.mxu0
      %v407 = vadd.f32 %v340, %v406
      %v408 = vpop.f32.mrf.mxu0
      %v409 = vadd.f32 %v340, %v408
      %410 = vmatmul.bf16.gmra.mxu0 %v353
      %v411 = vpop.f32.mrf.mxu0
      %v412 = vadd.f32 %v340, %v411
      %v413 = vpop.f32.mrf.mxu0
      %v414 = vadd.f32 %v340, %v413
      %415 = vmatmul.bf16.gmra.mxu0 %v356
      %v416 = vpop.f32.mrf.mxu0
      %v417 = vadd.f32 %v340, %v416
      %v418 = vpop.f32.mrf.mxu0
      %v419 = vadd.f32 %v340, %v418
      %420 = vmatmul.bf16.gmra.mxu0 %v359
      %v421 = vpop.f32.mrf.mxu0
      %v422 = vadd.f32 %v340, %v421
      %v423 = vpop.f32.mrf.mxu0
      %v424 = vadd.f32 %v340, %v423
      %425 = vmatmul.bf16.gmra.mxu0 %v362
      %v426 = vpop.f32.mrf.mxu0
      %v427 = vadd.f32 %v340, %v426
      %v428 = vpop.f32.mrf.mxu0
      %v429 = vadd.f32 %v340, %v428
      %430 = vmatmul.bf16.gmra.mxu0 %v365
      %v431 = vpop.f32.mrf.mxu0
      %v432 = vadd.f32 %v340, %v431
      %v433 = vpop.f32.mrf.mxu0
      %v434 = vadd.f32 %v340, %v433
      %435 = vmatmul.bf16.gmra.mxu0 %v368
      %v436 = vpop.f32.mrf.mxu0
      %v437 = vadd.f32 %v340, %v436
      %v438 = vpop.f32.mrf.mxu0
      %v439 = vadd.f32 %v340, %v438
      %440 = vmatmul.bf16.gmra.mxu0 %v371
      %v441 = vpop.f32.mrf.mxu0
      %v442 = vadd.f32 %v340, %v441
      %v443 = vpop.f32.mrf.mxu0
      %v444 = vadd.f32 %v340, %v443
      %445 = vmatmul.bf16.gmra.mxu0 %v374
      %v446 = vpop.f32.mrf.mxu0
      %v447 = vadd.f32 %v340, %v446
      %v448 = vpop.f32.mrf.mxu0
      %v449 = vadd.f32 %v340, %v448
      %450 = vmatmul.bf16.gmra.mxu0 %v377
      %v451 = vpop.f32.mrf.mxu0
      %v452 = vadd.f32 %v340, %v451
      %v453 = vpop.f32.mrf.mxu0
      %v454 = vadd.f32 %v340, %v453
      %455 = vmatmul.bf16.gmra.mxu0 %v380
      %v456 = vpop.f32.mrf.mxu0
      %v457 = vadd.f32 %v340, %v456
      %v458 = vpop.f32.mrf.mxu0
      %v459 = vadd.f32 %v340, %v458
      %460 = vmatmul.bf16.gmra.mxu0 %v383
      %v461 = vpop.f32.mrf.mxu0
      %v462 = vadd.f32 %v340, %v461
      %v463 = vpop.f32.mrf.mxu0
      %v464 = vadd.f32 %v340, %v463
      %465 = vmatmul.bf16.gmra.mxu0 %v386
      %v466 = vpop.f32.mrf.mxu0
      %v467 = vadd.f32 %v340, %v466
      %v468 = vpop.f32.mrf.mxu0
      %v469 = vadd.f32 %v340, %v468
      %470 = vmatmul.bf16.gmra.mxu0 %v389
      %v471 = vpop.f32.mrf.mxu0
      %v472 = vadd.f32 %v340, %v471
      %v473 = vpop.f32.mrf.mxu0
      %v474 = vadd.f32 %v340, %v473
      %475 = vmatmul.bf16.gmra.mxu0 %v392
      %v476 = vpop.f32.mrf.mxu0
      %v477 = vadd.f32 %v340, %v476
      %v478 = vpop.f32.mrf.mxu0
      %v479 = vadd.f32 %v340, %v478
      %480 = vmatmul.bf16.gmra.mxu0 %v395
      %v481 = vpop.f32.mrf.mxu0
      %v482 = vadd.f32 %v340, %v481
      %v483 = vpop.f32.mrf.mxu0
      %v484 = vadd.f32 %v340, %v483
      %485 = vdwg.mxu0
      %v486 = vmax.f32 %v407, 0.0
      %v487 = vmax.f32 %v409, 0.0
      %v488 = vmax.f32 %v412, 0.0
      %v489 = vmax.f32 %v414, 0.0
      %v490 = vmax.f32 %v417, 0.0
      %v491 = vmax.f32 %v419, 0.0
      %v492 = vmax.f32 %v422, 0.0
      %v493 = vmax.f32 %v424, 0.0
      %v494 = vmax.f32 %v427, 0.0
      %v495 = vmax.f32 %v429, 0.0
      %v496 = vmax.f32 %v432, 0.0
      %v497 = vmax.f32 %v434, 0.0
      %v498 = vmax.f32 %v437, 0.0
      %v499 = vmax.f32 %v439, 0.0
      %v500 = vmax.f32 %v442, 0.0
      %v501 = vmax.f32 %v444, 0.0
      %v502 = vmax.f32 %v447, 0.0
      %v503 = vmax.f32 %v449, 0.0
      %v504 = vmax.f32 %v452, 0.0
      %v505 = vmax.f32 %v454, 0.0
      %v506 = vmax.f32 %v457, 0.0
      %v507 = vmax.f32 %v459, 0.0
      %v508 = vmax.f32 %v462, 0.0
      %v509 = vmax.f32 %v464, 0.0
      %v510 = vmax.f32 %v467, 0.0
      %v511 = vmax.f32 %v469, 0.0
      %v512 = vmax.f32 %v472, 0.0
      %v513 = vmax.f32 %v474, 0.0
      %v514 = vmax.f32 %v477, 0.0
      %v515 = vmax.f32 %v479, 0.0
      %v516 = vmax.f32 %v482, 0.0
      %v517 = vmax.f32 %v484, 0.0
      %v518 = vpack.c.bf16 %v487, %v486
      %v519 = vpack.c.bf16 %v489, %v488
      %v520 = vpack.c.bf16 %v491, %v490
      %v521 = vpack.c.bf16 %v493, %v492
      %v522 = vpack.c.bf16 %v495, %v494
      %v523 = vpack.c.bf16 %v497, %v496
      %v524 = vpack.c.bf16 %v499, %v498
      %v525 = vpack.c.bf16 %v501, %v500
      %v526 = vpack.c.bf16 %v503, %v502
      %v527 = vpack.c.bf16 %v505, %v504
      %v528 = vpack.c.bf16 %v507, %v506
      %v529 = vpack.c.bf16 %v509, %v508
      %v530 = vpack.c.bf16 %v511, %v510
      %v531 = vpack.c.bf16 %v513, %v512
      %v532 = vpack.c.bf16 %v515, %v514
      %v533 = vpack.c.bf16 %v517, %v516
      %v534 = vld [vmem:[%s3] sm:$0xf]
      %v535 = vld [vmem:[%s3 + $0x4] sm:$0xf]
      %v536 = vld [vmem:[%s4] sm:$0x1]
      %v538 = vperm.slane %v536, 0
      %v542 = vunpack.c.l.b16 %v534
      %v543 = vunpack.c.l.b16 %v535
      %v544 = vpack.c.b16 %v543, %v542
      %v547 = vsel %vm348, %v518, 0
      %v550 = vsel %vm348, %v519, 0
      %v553 = vsel %vm348, %v520, 0
      %v556 = vsel %vm348, %v521, 0
      %v559 = vsel %vm348, %v522, 0
      %v562 = vsel %vm348, %v523, 0
      %v565 = vsel %vm348, %v524, 0
      %v568 = vsel %vm348, %v525, 0
      %v571 = vsel %vm348, %v526, 0
      %v574 = vsel %vm348, %v527, 0
      %v577 = vsel %vm348, %v528, 0
      %v580 = vsel %vm348, %v529, 0
      %v583 = vsel %vm348, %v530, 0
      %v586 = vsel %vm348, %v531, 0
      %v589 = vsel %vm348, %v532, 0
      %v592 = vsel %vm348, %v533, 0
      %594 = vmatpush.bf16.msra.mxu0 0
      %595 = vmatpush.bf16.msra.mxu0 0
      %596 = vmatpush.bf16.msra.mxu0 0
      %597 = vmatpush.bf16.msra.mxu0 0
      %598 = vmatpush.bf16.msra.mxu0 0
      %599 = vmatpush.bf16.msra.mxu0 0
      %600 = vmatpush.bf16.msra.mxu0 0
      %601 = vmatpush.bf16.msra.mxu0 %v544
      %602 = vmatmul.bf16.gmra.mxu0 %v547
      %v603 = vpop.f32.mrf.mxu0
      %v604 = vadd.f32 %v538, %v603
      %v605 = vpop.f32.mrf.mxu0
      %v606 = vadd.f32 %v538, %v605
      %607 = vmatmul.bf16.gmra.mxu0 %v550
      %v608 = vpop.f32.mrf.mxu0
      %v609 = vadd.f32 %v538, %v608
      %v610 = vpop.f32.mrf.mxu0
      %v611 = vadd.f32 %v538, %v610
      %612 = vmatmul.bf16.gmra.mxu0 %v553
      %v613 = vpop.f32.mrf.mxu0
      %v614 = vadd.f32 %v538, %v613
      %v615 = vpop.f32.mrf.mxu0
      %v616 = vadd.f32 %v538, %v615
      %617 = vmatmul.bf16.gmra.mxu0 %v556
      %v618 = vpop.f32.mrf.mxu0
      %v619 = vadd.f32 %v538, %v618
      %v620 = vpop.f32.mrf.mxu0
      %v621 = vadd.f32 %v538, %v620
      %622 = vmatmul.bf16.gmra.mxu0 %v559
      %v623 = vpop.f32.mrf.mxu0
      %v624 = vadd.f32 %v538, %v623
      %v625 = vpop.f32.mrf.mxu0
      %v626 = vadd.f32 %v538, %v625
      %627 = vmatmul.bf16.gmra.mxu0 %v562
      %v628 = vpop.f32.mrf.mxu0
      %v629 = vadd.f32 %v538, %v628
      %v630 = vpop.f32.mrf.mxu0
      %v631 = vadd.f32 %v538, %v630
      %632 = vmatmul.bf16.gmra.mxu0 %v565
      %v633 = vpop.f32.mrf.mxu0
      %v634 = vadd.f32 %v538, %v633
      %v635 = vpop.f32.mrf.mxu0
      %v636 = vadd.f32 %v538, %v635
      %637 = vmatmul.bf16.gmra.mxu0 %v568
      %v638 = vpop.f32.mrf.mxu0
      %v639 = vadd.f32 %v538, %v638
      %v640 = vpop.f32.mrf.mxu0
      %v641 = vadd.f32 %v538, %v640
      %642 = vmatmul.bf16.gmra.mxu0 %v571
      %v643 = vpop.f32.mrf.mxu0
      %v644 = vadd.f32 %v538, %v643
      %v645 = vpop.f32.mrf.mxu0
      %v646 = vadd.f32 %v538, %v645
      %647 = vmatmul.bf16.gmra.mxu0 %v574
      %v648 = vpop.f32.mrf.mxu0
      %v649 = vadd.f32 %v538, %v648
      %v650 = vpop.f32.mrf.mxu0
      %v651 = vadd.f32 %v538, %v650
      %652 = vmatmul.bf16.gmra.mxu0 %v577
      %v653 = vpop.f32.mrf.mxu0
      %v654 = vadd.f32 %v538, %v653
      %v655 = vpop.f32.mrf.mxu0
      %v656 = vadd.f32 %v538, %v655
      %657 = vmatmul.bf16.gmra.mxu0 %v580
      %v658 = vpop.f32.mrf.mxu0
      %v659 = vadd.f32 %v538, %v658
      %v660 = vpop.f32.mrf.mxu0
      %v661 = vadd.f32 %v538, %v660
      %662 = vmatmul.bf16.gmra.mxu0 %v583
      %v663 = vpop.f32.mrf.mxu0
      %v664 = vadd.f32 %v538, %v663
      %v665 = vpop.f32.mrf.mxu0
      %v666 = vadd.f32 %v538, %v665
      %667 = vmatmul.bf16.gmra.mxu0 %v586
      %v668 = vpop.f32.mrf.mxu0
      %v669 = vadd.f32 %v538, %v668
      %v670 = vpop.f32.mrf.mxu0
      %v671 = vadd.f32 %v538, %v670
      %672 = vmatmul.bf16.gmra.mxu0 %v589
      %v673 = vpop.f32.mrf.mxu0
      %v674 = vadd.f32 %v538, %v673
      %v675 = vpop.f32.mrf.mxu0
      %v676 = vadd.f32 %v538, %v675
      %677 = vmatmul.bf16.gmra.mxu0 %v592
      %v678 = vpop.f32.mrf.mxu0
      %v679 = vadd.f32 %v538, %v678
      %v680 = vpop.f32.mrf.mxu0
      %v681 = vadd.f32 %v538, %v680
      %682 = vdwg.mxu0
      %v683 = vld [vmem:[%s5] sm:$0xff]
      %v684 = vld [vmem:[%s5 + $0x8] sm:$0xff]
      %v686 = vsel %vm348, %v256, 0
      %v689 = vsel %vm348, %v257, 0
      %v692 = vsel %vm348, %v258, 0
      %v695 = vsel %vm348, %v259, 0
      %v698 = vsel %vm348, %v260, 0
      %v701 = vsel %vm348, %v261, 0
      %v704 = vsel %vm348, %v262, 0
      %v707 = vsel %vm348, %v263, 0
      %v710 = vsel %vm348, %v264, 0
      %v713 = vsel %vm348, %v265, 0
      %v716 = vsel %vm348, %v266, 0
      %v719 = vsel %vm348, %v267, 0
      %v722 = vsel %vm348, %v268, 0
      %v725 = vsel %vm348, %v269, 0
      %v728 = vsel %vm348, %v270, 0
      %v731 = vsel %vm348, %v271, 0
      %v734 = vsel %vm348, %v272, 0
      %v737 = vsel %vm348, %v273, 0
      %v740 = vsel %vm348, %v274, 0
      %v743 = vsel %vm348, %v275, 0
      %v746 = vsel %vm348, %v276, 0
      %v749 = vsel %vm348, %v277, 0
      %v752 = vsel %vm348, %v278, 0
      %v755 = vsel %vm348, %v279, 0
      %v758 = vsel %vm348, %v280, 0
      %v761 = vsel %vm348, %v281, 0
      %v764 = vsel %vm348, %v282, 0
      %v767 = vsel %vm348, %v283, 0
      %v770 = vsel %vm348, %v284, 0
      %v773 = vsel %vm348, %v285, 0
      %v776 = vsel %vm348, %v286, 0
      %v779 = vsel %vm348, %v287, 0
      %781 = vmatpush.msra.mxu0 0.0
      %782 = vmatpush.msra.mxu0 0.0
      %783 = vmatpush.msra.mxu0 0.0
      %784 = vmatpush.msra.mxu0 0.0
      %785 = vmatpush.msra.mxu0 0.0
      %786 = vmatpush.msra.mxu0 0.0
      %787 = vmatpush.msra.mxu0 0.0
      %788 = vmatpush.msra.mxu0 0.0
      %789 = vmatpush.msra.mxu0 0.0
      %790 = vmatpush.msra.mxu0 0.0
      %791 = vmatpush.msra.mxu0 0.0
      %792 = vmatpush.msra.mxu0 0.0
      %793 = vmatpush.msra.mxu0 0.0
      %794 = vmatpush.msra.mxu0 0.0
      %795 = vmatpush.msra.mxu0 %v684
      %796 = vmatpush.msra.mxu0 %v683
      %797 = vmatmul.f32.gmra.mxu0 %v686
      %v798 = vpop.f32.mrf.mxu0
      %v799 = vadd.f32 %v604, %v798
      %800 = vmatmul.f32.gmra.mxu0 %v689
      %v801 = vpop.f32.mrf.mxu0
      %v802 = vadd.f32 %v606, %v801
      %803 = vmatmul.f32.gmra.mxu0 %v692
      %v804 = vpop.f32.mrf.mxu0
      %v805 = vadd.f32 %v609, %v804
      %806 = vmatmul.f32.gmra.mxu0 %v695
      %v807 = vpop.f32.mrf.mxu0
      %v808 = vadd.f32 %v611, %v807
      %809 = vmatmul.f32.gmra.mxu0 %v698
      %v810 = vpop.f32.mrf.mxu0
      %v811 = vadd.f32 %v614, %v810
      %812 = vmatmul.f32.gmra.mxu0 %v701
      %v813 = vpop.f32.mrf.mxu0
      %v814 = vadd.f32 %v616, %v813
      %815 = vmatmul.f32.gmra.mxu0 %v704
      %v816 = vpop.f32.mrf.mxu0
      %v817 = vadd.f32 %v619, %v816
      %818 = vmatmul.f32.gmra.mxu0 %v707
      %v819 = vpop.f32.mrf.mxu0
      %v820 = vadd.f32 %v621, %v819
      %821 = vmatmul.f32.gmra.mxu0 %v710
      %v822 = vpop.f32.mrf.mxu0
      %v823 = vadd.f32 %v624, %v822
      %824 = vmatmul.f32.gmra.mxu0 %v713
      %v825 = vpop.f32.mrf.mxu0
      %v826 = vadd.f32 %v626, %v825
      %827 = vmatmul.f32.gmra.mxu0 %v716
      %v828 = vpop.f32.mrf.mxu0
      %v829 = vadd.f32 %v629, %v828
      %830 = vmatmul.f32.gmra.mxu0 %v719
      %v831 = vpop.f32.mrf.mxu0
      %v832 = vadd.f32 %v631, %v831
      %833 = vmatmul.f32.gmra.mxu0 %v722
      %v834 = vpop.f32.mrf.mxu0
      %v835 = vadd.f32 %v634, %v834
      %836 = vmatmul.f32.gmra.mxu0 %v725
      %v837 = vpop.f32.mrf.mxu0
      %v838 = vadd.f32 %v636, %v837
      %839 = vmatmul.f32.gmra.mxu0 %v728
      %v840 = vpop.f32.mrf.mxu0
      %v841 = vadd.f32 %v639, %v840
      %842 = vmatmul.f32.gmra.mxu0 %v731
      %v843 = vpop.f32.mrf.mxu0
      %v844 = vadd.f32 %v641, %v843
      %845 = vmatmul.f32.gmra.mxu0 %v734
      %v846 = vpop.f32.mrf.mxu0
      %v847 = vadd.f32 %v644, %v846
      %848 = vmatmul.f32.gmra.mxu0 %v737
      %v849 = vpop.f32.mrf.mxu0
      %v850 = vadd.f32 %v646, %v849
      %851 = vmatmul.f32.gmra.mxu0 %v740
      %v852 = vpop.f32.mrf.mxu0
      %v853 = vadd.f32 %v649, %v852
      %854 = vmatmul.f32.gmra.mxu0 %v743
      %v855 = vpop.f32.mrf.mxu0
      %v856 = vadd.f32 %v651, %v855
      %857 = vmatmul.f32.gmra.mxu0 %v746
      %v858 = vpop.f32.mrf.mxu0
      %v859 = vadd.f32 %v654, %v858
      %860 = vmatmul.f32.gmra.mxu0 %v749
      %v861 = vpop.f32.mrf.mxu0
      %v862 = vadd.f32 %v656, %v861
      %863 = vmatmul.f32.gmra.mxu0 %v752
      %v864 = vpop.f32.mrf.mxu0
      %v865 = vadd.f32 %v659, %v864
      %866 = vmatmul.f32.gmra.mxu0 %v755
      %v867 = vpop.f32.mrf.mxu0
      %v868 = vadd.f32 %v661, %v867
      %869 = vmatmul.f32.gmra.mxu0 %v758
      %v870 = vpop.f32.mrf.mxu0
      %v871 = vadd.f32 %v664, %v870
      %872 = vmatmul.f32.gmra.mxu0 %v761
      %v873 = vpop.f32.mrf.mxu0
      %v874 = vadd.f32 %v666, %v873
      %875 = vmatmul.f32.gmra.mxu0 %v764
      %v876 = vpop.f32.mrf.mxu0
      %v877 = vadd.f32 %v669, %v876
      %878 = vmatmul.f32.gmra.mxu0 %v767
      %v879 = vpop.f32.mrf.mxu0
      %v880 = vadd.f32 %v671, %v879
      %881 = vmatmul.f32.gmra.mxu0 %v770
      %v882 = vpop.f32.mrf.mxu0
      %v883 = vadd.f32 %v674, %v882
      %884 = vmatmul.f32.gmra.mxu0 %v773
      %v885 = vpop.f32.mrf.mxu0
      %v886 = vadd.f32 %v676, %v885
      %887 = vmatmul.f32.gmra.mxu0 %v776
      %v888 = vpop.f32.mrf.mxu0
      %v889 = vadd.f32 %v679, %v888
      %890 = vmatmul.f32.gmra.mxu0 %v779
      %v891 = vpop.f32.mrf.mxu0
      %v892 = vadd.f32 %v681, %v891
      %893 = vdwg.mxu0
      %vm894 = vcmask 261120
      %895 = vst.msk [vmem:[%s253] sm:$0xff] %vm894, %v799
      %896 = vst.msk [vmem:[%s253 + $0x8] sm:$0xff] %vm894, %v802
      %897 = vst.msk [vmem:[%s253 + $0x10] sm:$0xff] %vm894, %v805
      %898 = vst.msk [vmem:[%s253 + $0x18] sm:$0xff] %vm894, %v808
      %899 = vst.msk [vmem:[%s253 + $0x20] sm:$0xff] %vm894, %v811
      %900 = vst.msk [vmem:[%s253 + $0x28] sm:$0xff] %vm894, %v814
      %901 = vst.msk [vmem:[%s253 + $0x30] sm:$0xff] %vm894, %v817
      %902 = vst.msk [vmem:[%s253 + $0x38] sm:$0xff] %vm894, %v820
      %903 = vst.msk [vmem:[%s253 + $0x40] sm:$0xff] %vm894, %v823
      %904 = vst.msk [vmem:[%s253 + $0x48] sm:$0xff] %vm894, %v826
      %905 = vst.msk [vmem:[%s253 + $0x50] sm:$0xff] %vm894, %v829
      %906 = vst.msk [vmem:[%s253 + $0x58] sm:$0xff] %vm894, %v832
      %907 = vst.msk [vmem:[%s253 + $0x60] sm:$0xff] %vm894, %v835
      %908 = vst.msk [vmem:[%s253 + $0x68] sm:$0xff] %vm894, %v838
      %909 = vst.msk [vmem:[%s253 + $0x70] sm:$0xff] %vm894, %v841
      %910 = vst.msk [vmem:[%s253 + $0x78] sm:$0xff] %vm894, %v844
      %911 = vst.msk [vmem:[%s253 + $0x80] sm:$0xff] %vm894, %v847
      %912 = vst.msk [vmem:[%s253 + $0x88] sm:$0xff] %vm894, %v850
      %913 = vst.msk [vmem:[%s253 + $0x90] sm:$0xff] %vm894, %v853
      %914 = vst.msk [vmem:[%s253 + $0x98] sm:$0xff] %vm894, %v856
      %915 = vst.msk [vmem:[%s253 + $0xa0] sm:$0xff] %vm894, %v859
      %916 = vst.msk [vmem:[%s253 + $0xa8] sm:$0xff] %vm894, %v862
      %917 = vst.msk [vmem:[%s253 + $0xb0] sm:$0xff] %vm894, %v865
      %918 = vst.msk [vmem:[%s253 + $0xb8] sm:$0xff] %vm894, %v868
      %919 = vst.msk [vmem:[%s253 + $0xc0] sm:$0xff] %vm894, %v871
      %920 = vst.msk [vmem:[%s253 + $0xc8] sm:$0xff] %vm894, %v874
      %921 = vst.msk [vmem:[%s253 + $0xd0] sm:$0xff] %vm894, %v877
      %922 = vst.msk [vmem:[%s253 + $0xd8] sm:$0xff] %vm894, %v880
      %923 = vst.msk [vmem:[%s253 + $0xe0] sm:$0xff] %vm894, %v883
      %924 = vst.msk [vmem:[%s253 + $0xe8] sm:$0xff] %vm894, %v886
      %925 = vst.msk [vmem:[%s253 + $0xf0] sm:$0xff] %vm894, %v889
      %926 = vst.msk [vmem:[%s253 + $0xf8] sm:$0xff] %vm894, %v892
      %s927 = smul.u32 32, %s17
      %p928 = scmp.lt.s32.totalorder %s927, 127
      %s929 = scalar_select %p928, %s927, 127
      %s930 = smul.addr %s929, 8
      %s931 = scalar_lea.vmem %s6, %s930
      // Predicated region
      $region45: #{resnet_block_fc.1} parent=43 // pred_check
        %p932 = pneg %p166
      $region46: #{resnet_block_fc.1} parent=43 // pred_check_branch
        %934 = sbr.rel (%p932) target = $region48
      $region47: #{resnet_block_fc.1} parent=43 // pred_region
        %s935 = smul.u32 32, %s17
      $region48: #{resnet_block_fc.1} parent=43 // pred_fallthru
        _
    $region44: #{resnet_block_fc.1} parent=5 // pred_fallthru
      _
    %p936 = scmp.le.s32.totalorder 2, %s12
    // Predicated region
    $region49: #{resnet_block_fc.1} parent=5 // pred_check
      %p937 = pneg %p936
    $region50: #{resnet_block_fc.1} parent=5 // pred_check_branch
      %939 = sbr.rel (%p937) target = $region52
    $region51: #{resnet_block_fc.1} parent=5 // pred_region
      %s940 = ssub.s32 %s12, 2
      // Predicated region
      $region53: #{resnet_block_fc.1} parent=51 // pred_check
        %p941 = pneg %p172
      $region54: #{resnet_block_fc.1} parent=51 // pred_check_branch
        %943 = sbr.rel (%p941) target = $region56
      $region55: #{resnet_block_fc.1} parent=51 // pred_region
        %s944 = smul.u32 32, %s18
        %p945 = scmp.lt.s32.totalorder %s944, 127
        %s946 = scalar_select %p945, %s944, 127
        %s947 = smul.addr %s946, 8
        %s948 = scalar_lea.vmem %s6, %s947
      $region56: #{resnet_block_fc.1} parent=51 // pred_fallthru
        _
    $region52: #{resnet_block_fc.1} parent=5 // pred_fallthru
      _
  $region6: #{resnet_block_fc.1} parent=0 // loop_footer
    %s16 = sadd.s32 1, %s12
  $region7: #{resnet_block_fc.1} parent=0 // loop_footer_branch
    %11 = sbr.rel target = $region3
  $region8: #{resnet_block_fc.1} parent=0 // loop_exit
    _

</llo_original>
